<compile_context>
chip_gen: v7x
topology: tpu7x:2x2x1
jax: 0.10.0
libtpu: 0.0.40
codegen_flags: <defaults>
</compile_context>

<pallas_src>
import functools

import jax
import jax.numpy as jnp
from jax.experimental import pallas as pl
from jax.experimental.pallas import tpu as pltpu


def _round_up(v, m):
    return ((v + m - 1) // m) * m


def _pick_tile(dim, granule, cap, slack=1.5):
    """Pick a tile size (multiple of `granule`) for a dimension of size `dim`.

    Uses the full rounded dim when it is at most ~slack*cap (no grid axis, no
    padding).  Otherwise prefers a tile in (cap/2, cap] that divides the rounded
    dim (so the operand needs no padding), falling back to `cap`.
    """
    d = _round_up(dim, granule)
    if d <= int(cap * slack):
        return d
    t = cap
    while t > cap // 2:
        if d % t == 0:
            return t
        t -= granule
    return cap


@functools.lru_cache(maxsize=1)
def _hw_info():
    """(per-core VMEM capacity bytes, TensorCores per chip). Trace-time query."""
    vmem_cap = 64 * 1024 * 1024          # conservative fallback (v7x per-TC size)
    num_cores = 1
    try:
        info = pltpu.get_tpu_info()
        vmem_cap = int(getattr(info, "vmem_capacity_bytes", vmem_cap))
        nc = None
        for attr in ("num_tensorcores", "tensorcores_per_chip",
                     "num_cores_per_chip", "num_cores"):
            v = getattr(info, attr, None)
            if v:
                nc = int(v)
                break
        if nc is None:
            # Heuristic: v7x exposes 64 MiB per TC and has 2 TCs; v5e/v6e have
            # 128 MiB and a single TC.
            nc = 2 if vmem_cap <= 64 * 1024 * 1024 else 1
        num_cores = nc
    except Exception:
        pass
    return vmem_cap, num_cores


def _kernel_bias(x_ref, wt_ref, b_ref, o_ref, acc_ref):
    """One (tm, tn) output tile; grid axis 2 (K) is the reduction axis."""
    k = pl.program_id(2)

    @pl.when(k == 0)
    def _():
        # Fold the bias into the accumulator init (drops the epilogue VPU add).
        acc_ref[...] = jnp.broadcast_to(
            b_ref[...].astype(jnp.float32), acc_ref.shape)

    acc_ref[...] += jnp.dot(
        x_ref[...], wt_ref[...], preferred_element_type=jnp.float32)

    @pl.when(k == pl.num_programs(2) - 1)
    def _():
        o_ref[...] = acc_ref[...].astype(o_ref.dtype)


def _kernel_nobias(x_ref, wt_ref, o_ref, acc_ref):
    k = pl.program_id(2)

    @pl.when(k == 0)
    def _():
        acc_ref[...] = jnp.zeros_like(acc_ref)

    acc_ref[...] += jnp.dot(
        x_ref[...], wt_ref[...], preferred_element_type=jnp.float32)

    @pl.when(k == pl.num_programs(2) - 1)
    def _():
        o_ref[...] = acc_ref[...].astype(o_ref.dtype)


@functools.partial(jax.jit, static_argnames=("compute_dtype",))
def splinear_forward(x, weight_t, bias=None, *, compute_dtype=None):
    """out = x @ weight_t + bias.

    `weight_t` is the pre-transposed (input_features, output_features) = (K, N)
    weight; matches SpLinearFunc.forward(x, weight, bias) with weight_t == weight.T.
    `compute_dtype=jnp.bfloat16` casts x / weight_t for the MXU (half the HBM
    traffic, bf16-native MXU) while keeping the f32 accumulator and output dtype.
    """
    M, K = x.shape
    K2, N = weight_t.shape
    assert K == K2, "weight_t must be (input_features, output_features)"
    out_dtype = x.dtype

    if compute_dtype is not None:
        x = x.astype(compute_dtype)
        weight_t = weight_t.astype(compute_dtype)

    in_isz = jnp.dtype(x.dtype).itemsize
    out_isz = jnp.dtype(out_dtype).itemsize
    sub = 16 if in_isz == 2 else 8          # sublane packing of the compute dtype

    vmem_cap, num_cores = _hw_info()
    # ~65% of per-core VMEM: ≈41 MiB on v7x (64 MiB/TC), ≈83 MiB on v5e/v6e.
    budget = int(vmem_cap * 0.65)

    # ---- output tile (square-ish, up to 512x512) ------------------------------
    tm = _pick_tile(M, sub, 512)
    tn = _pick_tile(N, 128, 512)

    # Multi-TC chips only (v7x): if the parallel grid collapsed to one tile,
    # split so the second core has work.  Prefer splitting M; never drop tn
    # below 256 (keeps full MXU RHS width).
    if num_cores >= 2 and (_round_up(M, tm) // tm) * (_round_up(N, tn) // tn) == 1:
        if tm >= 2 * sub and (tm // 2) % sub == 0:
            tm //= 2
        elif tn >= 512 and tn % 256 == 0:
            tn //= 2

    m_pad = _round_up(M, tm)
    n_pad = _round_up(N, tn)

    # ---- K tile ----------------------------------------------------------------
    # K-tiling does not reduce HBM traffic: keep tk modest (<=1024), aim for >=4
    # K-steps so the pipeline can overlap the prologue DMA, and make tk divide
    # round_up(K,128) so the weight needs no extra K padding.
    fixed = 2 * tm * tn * out_isz + tm * tn * 4          # dbl-buffered out + f32 acc
    if bias is not None:
        fixed += 2 * tn * 4                               # dbl-buffered (1, tn) f32 bias
    avail = max(budget - fixed, 2 * in_isz * (tm + tn) * 128)
    tk = (avail // (2 * in_isz * (tm + tn))) // 128 * 128
    k128 = _round_up(K, 128)
    tk = max(128, min(tk, 1024, k128))
    if K >= 4 * 128:
        tk = min(tk, _round_up(pl.cdiv(K, 4), 128))
    while k128 % tk != 0 and tk > 128:
        tk -= 128
    k_pad = _round_up(K, tk)

    # ---- zero-pad to tile multiples (zero K padding is reduction-neutral) ------
    if (m_pad, k_pad) != (M, K):
        x = jnp.pad(x, ((0, m_pad - M), (0, k_pad - K)))
    if (k_pad, n_pad) != (K, N):
        # TODO(synk): for ragged K/N, pre-pad the weight once outside jit to avoid
        # a per-call HBM pass over the largest operand.
        weight_t = jnp.pad(weight_t, ((0, k_pad - K), (0, n_pad - N)))

    grid = (m_pad // tm, n_pad // tn, k_pad // tk)
    grid_m, grid_n, _ = grid

    vmem_bytes = 2 * tm * tk * in_isz + 2 * tk * tn * in_isz + fixed
    vmem_limit = int(min(vmem_cap - (2 << 20),
                         max(vmem_bytes + (16 << 20), 32 << 20)))

    # Truthful bytes: x is re-streamed grid_n times, the weight grid_m times.
    cost = pl.CostEstimate(
        flops=2 * m_pad * n_pad * k_pad,
        transcendentals=0,
        bytes_accessed=(grid_n * m_pad * k_pad * in_isz
                        + grid_m * k_pad * n_pad * in_isz
                        + m_pad * n_pad * out_isz
                        + (grid_m * n_pad * 4 if bias is not None else 0)),
    )

    x_spec = pl.BlockSpec((tm, tk), lambda i, j, k: (i, k))
    wt_spec = pl.BlockSpec((tk, tn), lambda i, j, k: (k, j))
    out_spec = pl.BlockSpec((tm, tn), lambda i, j, k: (i, j))
    compiler_params = pltpu.CompilerParams(
        dimension_semantics=("parallel", "parallel", "arbitrary"),
        vmem_limit_bytes=vmem_limit,
    )
    scratch = [pltpu.VMEM((tm, tn), jnp.float32)]
    out_shape = jax.ShapeDtypeStruct((m_pad, n_pad), out_dtype)

    if bias is not None:
        b2d = bias.astype(jnp.float32).reshape(1, N)
        if n_pad != N:
            b2d = jnp.pad(b2d, ((0, 0), (0, n_pad - N)))
        out = pl.pallas_call(
            _kernel_bias,
            out_shape=out_shape,
            grid_spec=pltpu.PrefetchScalarGridSpec(
                num_scalar_prefetch=0,
                grid=grid,
                in_specs=[
                    x_spec,
                    wt_spec,
                    pl.BlockSpec((1, tn), lambda i, j, k: (0, j)),
                ],
                out_specs=out_spec,
                scratch_shapes=scratch,
            ),
            compiler_params=compiler_params,
            cost_estimate=cost,
        )(x, weight_t, b2d)
    else:
        out = pl.pallas_call(
            _kernel_nobias,
            out_shape=out_shape,
            grid_spec=pltpu.PrefetchScalarGridSpec(
                num_scalar_prefetch=0,
                grid=grid,
                in_specs=[x_spec, wt_spec],
                out_specs=out_spec,
                scratch_shapes=scratch,
            ),
            compiler_params=compiler_params,
            cost_estimate=cost,
        )(x, weight_t)

    if (m_pad, n_pad) != (M, N):
        out = out[:M, :N]
    return out


def _reference(x, weight, bias):
    out = jnp.dot(x, weight.T, precision=jax.lax.Precision.HIGHEST)
    if bias is not None:
        out = out + bias[None, :]
    return out


if __name__ == "__main__":
    # Small shapes consistent with SpLinear(input_features, output_features).
    batch = 16
    input_features = 256
    output_features = 128

    key = jax.random.PRNGKey(0)
    kx, kw, kb = jax.random.split(key, 3)

    # Deterministic init mirroring the module: stdv = 1/sqrt(input_features).
    stdv = 1.0 / (input_features ** 0.5)
    weight = jax.random.uniform(
        kw, (output_features, input_features), jnp.float32, -stdv, stdv
    )
    bias = jax.random.uniform(kb, (output_features,), jnp.float32, -stdv, stdv)
    x = jax.random.normal(kx, (batch, input_features), jnp.float32)

    # Store the parameter pre-transposed (K, N); done once, outside the jit.
    weight_t = jnp.asarray(weight.T)

    # f32 path (matches the PyTorch f32 semantics).
    out = jax.block_until_ready(splinear_forward(x, weight_t, bias))
    ref = _reference(x, weight, bias)
    assert out.shape == (batch, output_features)
    assert jnp.allclose(out, ref, atol=1e-4, rtol=1e-4), "f32 mismatch vs reference"

    # bf16-compute path (f32 accumulation) — recommended fast path for inference.
    out_bf = jax.block_until_ready(
        splinear_forward(x, weight_t, bias, compute_dtype=jnp.bfloat16)
    )
    assert jnp.allclose(out_bf, ref, atol=3e-2, rtol=3e-2), "bf16 mismatch vs reference"

    # No-bias + non-tile-multiple shapes (exercises padding + 2-input kernel).
    M2, K2, N2 = 48, 333, 200
    k2x, k2w = jax.random.split(jax.random.PRNGKey(1))
    x2 = jax.random.normal(k2x, (M2, K2), jnp.float32)
    w2 = jax.random.uniform(k2w, (N2, K2), jnp.float32, -0.05, 0.05)
    w2_t = jnp.asarray(w2.T)
    out2 = jax.block_until_ready(splinear_forward(x2, w2_t, None))
    ref2 = _reference(x2, w2, None)
    assert out2.shape == (M2, N2)
    assert jnp.allclose(out2, ref2, atol=5e-4, rtol=5e-4), "no-bias mismatch vs reference"

    print("KERNEL_OK")
</pallas_src>

<mosaic_0001>
module attributes {stable_mosaic.version = 11 : i64} {
  func.func @_kernel_bias(%arg0: i32, %arg1: i32, %arg2: i32, %arg3: memref<16x256xf32, #tpu.memory_space<vmem>>, %arg4: memref<256x128xf32, #tpu.memory_space<vmem>>, %arg5: memref<1x128xf32, #tpu.memory_space<vmem>>, %arg6: memref<16x128xf32, #tpu.memory_space<vmem>>, %arg7: memref<16x128xf32, #tpu.memory_space<vmem>>) attributes {dimension_semantics = [#tpu.dimension_semantics<parallel>, #tpu.dimension_semantics<parallel>, #tpu.dimension_semantics<arbitrary>], iteration_bounds = array<i64: 1, 1, 1>, scalar_prefetch = 0 : i64, scratch_operands = 1 : i64, tpu.core_type = #tpu.core_type<tc>, window_params = [{transform_indices = @transform_0, window_bounds = array<i64: 16, 256>}, {transform_indices = @transform_1, window_bounds = array<i64: 256, 128>}, {transform_indices = @transform_2, window_bounds = array<i64: 1, 128>}, {transform_indices = @transform_3, window_bounds = array<i64: 16, 128>}]} {
    %c0_i32 = arith.constant 0 : i32
    %0 = arith.cmpi eq, %arg2, %c0_i32 : i32
    %1 = arith.extui %0 : i1 to i32
    %c0_i32_0 = arith.constant 0 : i32
    %2 = arith.cmpi ne, %1, %c0_i32_0 : i32
    scf.if %2 {
      %c0_10 = arith.constant 0 : index
      %c0_11 = arith.constant 0 : index
      %12 = vector.load %arg5[%c0_10, %c0_11] : memref<1x128xf32, #tpu.memory_space<vmem>>, vector<1x128xf32>
      %13 = vector.shape_cast %12 : vector<1x128xf32> to vector<1x128xf32>
      %14 = vector.broadcast %13 : vector<1x128xf32> to vector<16x128xf32>
      %c0_12 = arith.constant 0 : index
      %c0_13 = arith.constant 0 : index
      %15 = vector.load %arg7[%c0_12, %c0_13] : memref<16x128xf32, #tpu.memory_space<vmem>>, vector<16x128xf32>
      tpu.vector_store %arg7[%c0_12, %c0_13], %14 {strides = array<i32>} : memref<16x128xf32, #tpu.memory_space<vmem>>, vector<16x128xf32>,
    } else {
    }
    %c0 = arith.constant 0 : index
    %c0_1 = arith.constant 0 : index
    %3 = vector.load %arg7[%c0, %c0_1] : memref<16x128xf32, #tpu.memory_space<vmem>>, vector<16x128xf32>
    %c0_2 = arith.constant 0 : index
    %c0_3 = arith.constant 0 : index
    %4 = vector.load %arg3[%c0_2, %c0_3] : memref<16x256xf32, #tpu.memory_space<vmem>>, vector<16x256xf32>
    %c0_4 = arith.constant 0 : index
    %c0_5 = arith.constant 0 : index
    %5 = vector.load %arg4[%c0_4, %c0_5] : memref<256x128xf32, #tpu.memory_space<vmem>>, vector<256x128xf32>
    %cst = arith.constant dense<0.000000e+00> : vector<16x128xf32>
    %6 = tpu.matmul %4, %5, %cst {dimension_numbers = #tpu.dot_dimension_numbers<[1], [0], [0], [1], [0, 0, 1, 1], [], []>} : vector<16x256xf32>, vector<256x128xf32>, vector<16x128xf32> -> vector<16x128xf32>
    %7 = arith.addf %3, %6 : vector<16x128xf32>
    %c0_6 = arith.constant 0 : index
    %c0_7 = arith.constant 0 : index
    %8 = vector.load %arg7[%c0_6, %c0_7] : memref<16x128xf32, #tpu.memory_space<vmem>>, vector<16x128xf32>
    tpu.vector_store %arg7[%c0_6, %c0_7], %7 {strides = array<i32>} : memref<16x128xf32, #tpu.memory_space<vmem>>, vector<16x128xf32>,
    %c0_i32_8 = arith.constant 0 : i32
    %9 = arith.cmpi eq, %arg2, %c0_i32_8 : i32
    %10 = arith.extui %9 : i1 to i32
    %c0_i32_9 = arith.constant 0 : i32
    %11 = arith.cmpi ne, %10, %c0_i32_9 : i32
    scf.if %11 {
      %c0_10 = arith.constant 0 : index
      %c0_11 = arith.constant 0 : index
      %12 = vector.load %arg7[%c0_10, %c0_11] : memref<16x128xf32, #tpu.memory_space<vmem>>, vector<16x128xf32>
      %c0_12 = arith.constant 0 : index
      %c0_13 = arith.constant 0 : index
      %13 = vector.load %arg6[%c0_12, %c0_13] : memref<16x128xf32, #tpu.memory_space<vmem>>, vector<16x128xf32>
      tpu.vector_store %arg6[%c0_12, %c0_13], %12 {strides = array<i32>} : memref<16x128xf32, #tpu.memory_space<vmem>>, vector<16x128xf32>,
    } else {
    }
    return
  }
  func.func @transform_0(%arg0: i32, %arg1: i32, %arg2: i32) -> (i32, i32) {
    %c0_i32 = arith.constant 0 : i32
    return %arg0, %arg2 : i32, i32
  }
  func.func @transform_1(%arg0: i32, %arg1: i32, %arg2: i32) -> (i32, i32) {
    %c0_i32 = arith.constant 0 : i32
    return %arg2, %arg1 : i32, i32
  }
  func.func @transform_2(%arg0: i32, %arg1: i32, %arg2: i32) -> (i32, i32) {
    %c0_i32 = arith.constant 0 : i32
    %c0_i32_0 = arith.constant 0 : i32
    return %c0_i32, %arg1 : i32, i32
  }
  func.func @transform_3(%arg0: i32, %arg1: i32, %arg2: i32) -> (i32, i32) {
    %c0_i32 = arith.constant 0 : i32
    return %arg0, %arg1 : i32, i32
  }
}

</mosaic_0001>

<llo_original>
// kernel: splinear_forward.1
$region0: #{splinear_forward.1}
  #allocation0 [shape = 'u32[]', space=smem, size = 0x4, offset = 0x4, fixed_abs, tag = 'smem constant byte address 0x4 - core index']
  #allocation1 [shape = 'u32[144,128]{1,0:T(1,128)}', space=vmem, size = 0x12000, scoped, tag = 'internal scratch']
  #allocation2 [shape = 'f32[16,128]{1,0:T(8,128)}', space=vmem, size = 0x2000, scoped, tag = 'scratch operand']
  %s0 = inlined_call_operand.hbm [shape: f32[16,256], index: 0, kind: input, shape index: {}]
  %s1 = inlined_call_operand.hbm [shape: f32[256,128], index: 1, kind: input, shape index: {}]
  %s2 = inlined_call_operand.vmem [shape: f32[1,128], index: 2, kind: input, shape index: {}]
  %s3 = inlined_call_operand.hbm [shape: f32[16,128], index: 3, kind: output, shape index: {}]
  %s4 = sld [smem:[#allocation0]]
  $region38: #{splinear_forward.1} parent=0
    _
  %s6 = ssub.s32 1, %s4
  %s7 = scalar_select 0, %s6, %s4
  $region1: #{splinear_forward.1} parent=0
    #allocation3 [shape = 'u8[16384]{0}', space=vmem, size = 0x4000, scoped, tag = 'input window, operand 0, single buffered']
    #allocation4 [shape = 's32[1]{0}', space=sflag, size = 0x4, scoped, tag = 'scoped memory for splinear_forward.1']
    #allocation5 [shape = 's32[1]{0}', space=sflag, size = 0x4, scoped, tag = 'scoped memory for splinear_forward.1']
    #allocation6 [shape = 'u8[131072]{0}', space=vmem, size = 0x20000, scoped, tag = 'input window, operand 1, single buffered']
    #allocation7 [shape = 's32[1]{0}', space=sflag, size = 0x4, scoped, tag = 'scoped memory for splinear_forward.1']
    #allocation8 [shape = 'u8[8192]{0}', space=vmem, size = 0x2000, scoped, tag = 'output window, operand 0, single buffered']
    %8 = vsyncpa [#allocation4], 0
    %9 = vsyncpa [#allocation7], 0
    %10 = vsyncpa [#allocation5], 0
    // Predicated region
    $region2: #{splinear_forward.1} parent=1 // pred_check
      _
    $region3: #{splinear_forward.1} parent=1 // pred_check_branch
      %12 = sbr.rel (0) target = $region5
    $region4: #{splinear_forward.1} parent=1 // pred_region
      %s14 = ssub.s32 512, 512
      %15 = vsyncadd [#allocation4], %s14
      %s16 = sshll.u32 [#allocation3], 4
      %s17 = int_to_ptr.vmem [resolvable:$true] %s16
      %22 = dma.hbm_to_vmem [thread:$0]  %s0, 512, %s17, [#allocation4], 256, 256, 16
    $region5: #{splinear_forward.1} parent=1 // pred_fallthru
      _
    // Predicated region
    $region6: #{splinear_forward.1} parent=1 // pred_check
      _
    $region7: #{splinear_forward.1} parent=1 // pred_check_branch
      %24 = sbr.rel (0) target = $region9
    $region8: #{splinear_forward.1} parent=1 // pred_region
      %s26 = ssub.s32 4096, 4096
      %27 = vsyncadd [#allocation7], %s26
      %s28 = sshll.u32 [#allocation6], 4
      %s29 = int_to_ptr.vmem [resolvable:$true] %s28
      %34 = dma.hbm_to_vmem [thread:$0]  %s1, 4096, %s29, [#allocation7], 128, 128, 8
    $region9: #{splinear_forward.1} parent=1 // pred_fallthru
      _
    // Predicated region
    $region10: #{splinear_forward.1} parent=1 // pred_check
      _
    $region11: #{splinear_forward.1} parent=1 // pred_check_branch
      %36 = sbr.rel (0) target = $region13
    $region12: #{splinear_forward.1} parent=1 // pred_region
      _
    $region13: #{splinear_forward.1} parent=1 // pred_fallthru
      _
    // Predicated region
    $region14: #{splinear_forward.1} parent=1 // pred_check
      _
    $region15: #{splinear_forward.1} parent=1 // pred_check_branch
      %38 = sbr.rel (0) target = $region17
    $region16: #{splinear_forward.1} parent=1 // pred_region
      %39 = dma.done [#allocation4], 512
    $region17: #{splinear_forward.1} parent=1 // pred_fallthru
      _
    // Predicated region
    $region18: #{splinear_forward.1} parent=1 // pred_check
      _
    $region19: #{splinear_forward.1} parent=1 // pred_check_branch
      %41 = sbr.rel (0) target = $region21
    $region20: #{splinear_forward.1} parent=1 // pred_region
      %42 = dma.done [#allocation7], 4096
    $region21: #{splinear_forward.1} parent=1 // pred_fallthru
      _
    %p43 = scmp.eq.s32.totalorder 0, 0
    // Predicated region
    $region22: #{splinear_forward.1} parent=1 // pred_check
      %p44 = pneg %p43
    $region23: #{splinear_forward.1} parent=1 // pred_check_branch
      %46 = sbr.rel (%p44) target = $region25
    $region24: #{splinear_forward.1} parent=1 // pred_region
      %v47 = vld [vmem:[%s2] sm:$0x1]
      %v49 = vlaneseq
      %v50 = vshrl.u32 %v49, 7
      %v51 = vsub.s32 0, %v50
      %v52 = vrot.slane %v47, %v51
      %54 = vst [vmem:[#allocation2] sm:$0xff] %v52
      %55 = vst [vmem:[#allocation2 + $0x8] sm:$0xff] %v52
    $region25: #{splinear_forward.1} parent=1 // pred_fallthru
      _
    %v56 = vld [vmem:[#allocation2] sm:$0xff]
    %v57 = vld [vmem:[#allocation2 + $0x8] sm:$0xff]
    %v58 = vld [vmem:[#allocation3] sm:$0xff]
    %v59 = vld [vmem:[#allocation3 + $0x8] sm:$0xff]
    %v60 = vld [vmem:[#allocation3 + $0x10] sm:$0xff]
    %v61 = vld [vmem:[#allocation3 + $0x18] sm:$0xff]
    %v62 = vld [vmem:[#allocation6] sm:$0xff]
    %v63 = vld [vmem:[#allocation6 + $0x8] sm:$0xff]
    %v64 = vld [vmem:[#allocation6 + $0x10] sm:$0xff]
    %v65 = vld [vmem:[#allocation6 + $0x18] sm:$0xff]
    %v66 = vld [vmem:[#allocation6 + $0x20] sm:$0xff]
    %v67 = vld [vmem:[#allocation6 + $0x28] sm:$0xff]
    %v68 = vld [vmem:[#allocation6 + $0x30] sm:$0xff]
    %v69 = vld [vmem:[#allocation6 + $0x38] sm:$0xff]
    %v70 = vld [vmem:[#allocation6 + $0x40] sm:$0xff]
    %v71 = vld [vmem:[#allocation6 + $0x48] sm:$0xff]
    %v72 = vld [vmem:[#allocation6 + $0x50] sm:$0xff]
    %v73 = vld [vmem:[#allocation6 + $0x58] sm:$0xff]
    %v74 = vld [vmem:[#allocation6 + $0x60] sm:$0xff]
    %v75 = vld [vmem:[#allocation6 + $0x68] sm:$0xff]
    %v76 = vld [vmem:[#allocation6 + $0x70] sm:$0xff]
    %v77 = vld [vmem:[#allocation6 + $0x78] sm:$0xff]
    %v78 = vld [vmem:[#allocation6 + $0x80] sm:$0xff]
    %v79 = vld [vmem:[#allocation6 + $0x88] sm:$0xff]
    %v80 = vld [vmem:[#allocation6 + $0x90] sm:$0xff]
    %v81 = vld [vmem:[#allocation6 + $0x98] sm:$0xff]
    %v82 = vld [vmem:[#allocation6 + $0xa0] sm:$0xff]
    %v83 = vld [vmem:[#allocation6 + $0xa8] sm:$0xff]
    %v84 = vld [vmem:[#allocation6 + $0xb0] sm:$0xff]
    %v85 = vld [vmem:[#allocation6 + $0xb8] sm:$0xff]
    %v86 = vld [vmem:[#allocation6 + $0xc0] sm:$0xff]
    %v87 = vld [vmem:[#allocation6 + $0xc8] sm:$0xff]
    %v88 = vld [vmem:[#allocation6 + $0xd0] sm:$0xff]
    %v89 = vld [vmem:[#allocation6 + $0xd8] sm:$0xff]
    %v90 = vld [vmem:[#allocation6 + $0xe0] sm:$0xff]
    %v91 = vld [vmem:[#allocation6 + $0xe8] sm:$0xff]
    %v92 = vld [vmem:[#allocation6 + $0xf0] sm:$0xff]
    %v93 = vld [vmem:[#allocation6 + $0xf8] sm:$0xff]
    %94 = vmatprep.subr.mxu0 0.0
    %95 = vmatpush1.msra.mxu0 %v62
    %96 = vmatprep.subr.mxu0 0.0
    %97 = vmatpush1.msra.mxu0 %v63
    %98 = vmatprep.subr.mxu0 0.0
    %99 = vmatpush1.msra.mxu0 %v64
    %100 = vmatprep.subr.mxu0 0.0
    %101 = vmatpush1.msra.mxu0 %v65
    %102 = vmatprep.subr.mxu0 0.0
    %103 = vmatpush1.msra.mxu0 %v66
    %104 = vmatprep.subr.mxu0 0.0
    %105 = vmatpush1.msra.mxu0 %v67
    %106 = vmatprep.subr.mxu0 0.0
    %107 = vmatpush1.msra.mxu0 %v68
    %108 = vmatprep.subr.mxu0 0.0
    %109 = vmatpush1.msra.mxu0 %v69
    %110 = vmatprep.subr.mxu0 0.0
    %111 = vmatpush1.msra.mxu0 %v70
    %112 = vmatprep.subr.mxu0 0.0
    %113 = vmatpush1.msra.mxu0 %v71
    %114 = vmatprep.subr.mxu0 0.0
    %115 = vmatpush1.msra.mxu0 %v72
    %116 = vmatprep.subr.mxu0 0.0
    %117 = vmatpush1.msra.mxu0 %v73
    %118 = vmatprep.subr.mxu0 0.0
    %119 = vmatpush1.msra.mxu0 %v74
    %120 = vmatprep.subr.mxu0 0.0
    %121 = vmatpush1.msra.mxu0 %v75
    %122 = vmatprep.subr.mxu0 0.0
    %123 = vmatpush1.msra.mxu0 %v76
    %124 = vmatprep.subr.mxu0 0.0
    %125 = vmatpush1.msra.mxu0 %v77
    %126 = vmatprep.subr.mxu0 0.0
    %127 = vmatpush1.msra.mxu0 %v78
    %128 = vmatprep.subr.mxu0 0.0
    %129 = vmatpush1.msra.mxu0 %v79
    %130 = vmatprep.subr.mxu0 0.0
    %131 = vmatpush1.msra.mxu0 %v80
    %132 = vmatprep.subr.mxu0 0.0
    %133 = vmatpush1.msra.mxu0 %v81
    %134 = vmatprep.subr.mxu0 0.0
    %135 = vmatpush1.msra.mxu0 %v82
    %136 = vmatprep.subr.mxu0 0.0
    %137 = vmatpush1.msra.mxu0 %v83
    %138 = vmatprep.subr.mxu0 0.0
    %139 = vmatpush1.msra.mxu0 %v84
    %140 = vmatprep.subr.mxu0 0.0
    %141 = vmatpush1.msra.mxu0 %v85
    %142 = vmatprep.subr.mxu0 0.0
    %143 = vmatpush1.msra.mxu0 %v86
    %144 = vmatprep.subr.mxu0 0.0
    %145 = vmatpush1.msra.mxu0 %v87
    %146 = vmatprep.subr.mxu0 0.0
    %147 = vmatpush1.msra.mxu0 %v88
    %148 = vmatprep.subr.mxu0 0.0
    %149 = vmatpush1.msra.mxu0 %v89
    %150 = vmatprep.subr.mxu0 0.0
    %151 = vmatpush1.msra.mxu0 %v90
    %152 = vmatprep.subr.mxu0 0.0
    %153 = vmatpush1.msra.mxu0 %v91
    %154 = vmatprep.subr.mxu0 0.0
    %155 = vmatpush1.msra.mxu0 %v92
    %156 = vmatprep.subr.mxu0 0.0
    %157 = vmatpush1.msra.mxu0 %v93
    %158 = vmatprep.mubr.f32.mxu0 %v59
    %159 = vmatmul.mubr.f32.gmra.mrb[0].mxu0 %v58
    %v160 = vpop.f32.mrb[0].mxu0
    %v161 = vadd.f32 0.0, %v160
    %v162 = vpop.f32.mrb[0].mxu0
    %163 = vmatprep.mubr.f32.mxu0 %v61
    %164 = vmatmul.mubr.f32.gmra.mrb[0].mxu0 %v60
    %v165 = vpop.f32.mrb[0].mxu0
    %v166 = vadd.f32 0.0, %v165
    %v167 = vpop.f32.mrb[0].mxu0
    %168 = vdwg.mxu0
    %v169 = vadd.f32 %v56, %v161
    %v170 = vadd.f32 %v57, %v166
    %171 = vst [vmem:[#allocation2] sm:$0xff] %v169
    %172 = vst [vmem:[#allocation2 + $0x8] sm:$0xff] %v170
    // Predicated region
    $region26: #{splinear_forward.1} parent=1 // pred_check
      %p173 = pneg %p43
    $region27: #{splinear_forward.1} parent=1 // pred_check_branch
      %175 = sbr.rel (%p173) target = $region29
    $region28: #{splinear_forward.1} parent=1 // pred_region
      %v176 = vld [vmem:[#allocation2] sm:$0xff]
      %v177 = vld [vmem:[#allocation2 + $0x8] sm:$0xff]
      %178 = vst [vmem:[#allocation8] sm:$0xff] %v176
      %179 = vst [vmem:[#allocation8 + $0x8] sm:$0xff] %v177
    $region29: #{splinear_forward.1} parent=1 // pred_fallthru
      _
    // Predicated region
    $region30: #{splinear_forward.1} parent=1 // pred_check
      _
    $region31: #{splinear_forward.1} parent=1 // pred_check_branch
      %181 = sbr.rel (0) target = $region33
    $region32: #{splinear_forward.1} parent=1 // pred_region
      %s183 = ssub.s32 256, 256
      %184 = vsyncadd [#allocation5], %s183
      %s185 = sshll.u32 [#allocation8], 4
      %s186 = int_to_ptr.vmem [resolvable:$true] %s185
      %191 = dma.vmem_to_hbm [thread:$0]  %s186, 256, %s3, [#allocation5], 128, 128, 8
    $region33: #{splinear_forward.1} parent=1 // pred_fallthru
      _
    // Predicated region
    $region34: #{splinear_forward.1} parent=1 // pred_check
      _
    $region35: #{splinear_forward.1} parent=1 // pred_check_branch
      %193 = sbr.rel (0) target = $region37
    $region36: #{splinear_forward.1} parent=1 // pred_region
      %194 = dma.done [#allocation5], 256
    $region37: #{splinear_forward.1} parent=1 // pred_fallthru
      _
    %195 = vsyncpa [#allocation4], 1
    %196 = vsyncpa [#allocation7], 1
    %197 = vsyncpa [#allocation5], 1

</llo_original>
